<compile_context>
chip_gen: v6e
topology: v6e:2x2x1
jax: 0.10.0
libtpu: 0.0.40
codegen_flags: <defaults>
</compile_context>

<pallas_src>
import jax
import jax.numpy as jnp
from jax.experimental import pallas as pl
from jax.experimental.pallas import tpu as pltpu


def _clipped_tanh_kernel(x_ref, o_ref):
    x = x_ref[...]
    # compute in f32 for transcendental accuracy (v5e has no bf16 EUP),
    # cast back to the input dtype
    t = jnp.tanh(x.astype(jnp.float32))
    o_ref[...] = (0.4995 * t + 0.5).astype(o_ref.dtype)


_LANE_CANDIDATES = (8192, 4096, 2048, 1024, 512, 256, 128)
_TARGET_TILE_BYTES = 4 * 1024 * 1024  # ~4 MiB tile -> <=16 MiB double-buffered


def _sublane_multiple(dtype) -> int:
    # 32-bit -> 8, 16-bit -> 16, 8-bit -> 32 (sublane packing)
    itemsize = jnp.dtype(dtype).itemsize
    return max(8, 8 * (4 // max(1, itemsize)))


def clipped_tanh(x: jax.Array) -> jax.Array:
    """Apply 0.5 * (1 + 0.999 * tanh(x)) elementwise via a Pallas TPU kernel."""
    orig_shape = x.shape
    dtype = x.dtype
    n = x.size
    if n == 0:
        return x
    itemsize = jnp.dtype(dtype).itemsize

    # Pick a lane-dense width (multiple of 128) that divides n exactly so we
    # can reshape without any padding copy.
    lane = None
    for c in _LANE_CANDIDATES:
        if n % c == 0:
            lane = c
            break

    x_flat = jnp.ravel(x)
    padded = False
    if lane is None:
        if n < 128:
            # Tiny input: a (1, n) block equals the full array dims -> legal
            # without any padding.
            lane = n
            rows = 1
        else:
            # Rare fallback (element count not a multiple of 128): minimal pad.
            padded = True
            lane = 128
            rows = pl.cdiv(n, lane)
            x_flat = jnp.pad(x_flat, (0, rows * lane - n))
    else:
        rows = n // lane

    x2d = x_flat.reshape(rows, lane)

    # Tile sizing: ~_TARGET_TILE_BYTES per block, rounded to the sublane
    # multiple for this dtype, clamped to the real row count for small inputs.
    sub = _sublane_multiple(dtype)
    block_rows = max(sub, (_TARGET_TILE_BYTES // (lane * itemsize)) // sub * sub)
    if block_rows >= rows:
        block_rows = rows  # full-extent block dim is always a legal shape
    grid = (pl.cdiv(rows, block_rows),)

    cost = pl.CostEstimate(
        flops=2 * n,
        transcendentals=n,
        bytes_accessed=2 * n * itemsize,
    )

    out2d = pl.pallas_call(
        _clipped_tanh_kernel,
        out_shape=jax.ShapeDtypeStruct((rows, lane), dtype),
        grid_spec=pltpu.PrefetchScalarGridSpec(
            num_scalar_prefetch=0,
            grid=grid,
            in_specs=[pl.BlockSpec((block_rows, lane), lambda i: (i, 0))],
            out_specs=pl.BlockSpec((block_rows, lane), lambda i: (i, 0)),
        ),
        compiler_params=pltpu.CompilerParams(
            dimension_semantics=("parallel",),   # shard rows across TCs (v7x)
            vmem_limit_bytes=48 * 1024 * 1024,   # headroom, < 64 MiB v7x phys
        ),
        cost_estimate=cost,
    )(x2d)

    if padded:
        return out2d.reshape(-1)[:n].reshape(orig_shape)
    return out2d.reshape(orig_shape)


def clipped_tanh_ref(x):
    return (0.5 * (1.0 + 0.999 * jnp.tanh(x.astype(jnp.float32)))).astype(x.dtype)


if __name__ == "__main__":
    key = jax.random.PRNGKey(0)
    # small NCHW input, consistent with a conv-style activation module
    x = jax.random.normal(key, (2, 4, 16, 16), dtype=jnp.float32) * 3.0

    y = clipped_tanh(x)
    y = jax.block_until_ready(y)

    y_ref = clipped_tanh_ref(x)
    assert y.shape == x.shape and y.dtype == x.dtype
    assert jnp.allclose(y, y_ref, atol=1e-6, rtol=1e-6), "mismatch vs reference"

    print("KERNEL_OK")
</pallas_src>

<mosaic_0001>
module attributes {stable_mosaic.version = 11 : i64} {
  func.func @_clipped_tanh_kernel(%arg0: i32, %arg1: memref<1x2048xf32, #tpu.memory_space<vmem>>, %arg2: memref<1x2048xf32, #tpu.memory_space<vmem>>) attributes {dimension_semantics = [#tpu.dimension_semantics<parallel>], iteration_bounds = array<i64: 1>, scalar_prefetch = 0 : i64, scratch_operands = 0 : i64, tpu.core_type = #tpu.core_type<tc>, window_params = [{transform_indices = @transform_0, window_bounds = array<i64: 1, 2048>}, {transform_indices = @transform_1, window_bounds = array<i64: 1, 2048>}]} {
    %c0 = arith.constant 0 : index
    %c0_0 = arith.constant 0 : index
    %0 = vector.load %arg1[%c0, %c0_0] : memref<1x2048xf32, #tpu.memory_space<vmem>>, vector<1x2048xf32>
    %1 = math.tanh %0 : vector<1x2048xf32>
    %cst = arith.constant 4.995000e-01 : f32
    %2 = vector.broadcast %cst : f32 to vector<1x2048xf32>
    %3 = arith.mulf %2, %1 : vector<1x2048xf32>
    %cst_1 = arith.constant 5.000000e-01 : f32
    %4 = vector.broadcast %cst_1 : f32 to vector<1x2048xf32>
    %5 = arith.addf %3, %4 : vector<1x2048xf32>
    %c0_2 = arith.constant 0 : index
    %c0_3 = arith.constant 0 : index
    %6 = vector.load %arg2[%c0_2, %c0_3] : memref<1x2048xf32, #tpu.memory_space<vmem>>, vector<1x2048xf32>
    tpu.vector_store %arg2[%c0_2, %c0_3], %5 {strides = array<i32>} : memref<1x2048xf32, #tpu.memory_space<vmem>>, vector<1x2048xf32>,
    return
  }
  func.func @transform_0(%arg0: i32) -> (i32, i32) {
    %c0_i32 = arith.constant 0 : i32
    %c0_i32_0 = arith.constant 0 : i32
    return %arg0, %c0_i32 : i32, i32
  }
  func.func @transform_1(%arg0: i32) -> (i32, i32) {
    %c0_i32 = arith.constant 0 : i32
    %c0_i32_0 = arith.constant 0 : i32
    return %arg0, %c0_i32 : i32, i32
  }
}

</mosaic_0001>

<llo_original>
// kernel: tpu_custom_call.1
$region0: #{tpu_custom_call.1}
  #allocation0 [shape = 'u32[]', space=smem, size = 0x4, offset = 0x4, fixed_abs, tag = 'smem constant byte address 0x4 - core index']
  #allocation1 [shape = 'u32[144,128]{1,0:T(1,128)}', space=vmem, size = 0x12000, scoped, tag = 'internal scratch']
  %s0 = inlined_call_operand.hbm [shape: f32[1,2048], index: 0, kind: input, shape index: {}]
  %s1 = inlined_call_operand.hbm [shape: f32[1,2048], index: 1, kind: output, shape index: {}]
  %s2 = sld [smem:[#allocation0]]
  $region18: #{tpu_custom_call.1} parent=0
    _
  %s4 = ssub.s32 1, %s2
  %s5 = scalar_select 0, %s4, %s2
  $region1: #{tpu_custom_call.1} parent=0
    #allocation2 [shape = 'u8[8192]{0}', space=vmem, size = 0x2000, scoped, tag = 'input window, operand 0, single buffered']
    #allocation3 [shape = 's32[1]{0}', space=sflag, size = 0x4, scoped, tag = 'scoped memory for tpu_custom_call.1']
    #allocation4 [shape = 's32[1]{0}', space=sflag, size = 0x4, scoped, tag = 'scoped memory for tpu_custom_call.1']
    #allocation5 [shape = 'u8[8192]{0}', space=vmem, size = 0x2000, scoped, tag = 'output window, operand 0, single buffered']
    %6 = vsyncpa [#allocation3], 0
    %7 = vsyncpa [#allocation4], 0
    // Predicated region
    $region2: #{tpu_custom_call.1} parent=1 // pred_check
      _
    $region3: #{tpu_custom_call.1} parent=1 // pred_check_branch
      %9 = sbr.rel (0) target = $region5
    $region4: #{tpu_custom_call.1} parent=1 // pred_region
      %s11 = ssub.s32 256, 256
      %12 = vsyncadd [#allocation3], %s11
      %s14 = sshll.u32 [#allocation2], 4
      %s15 = int_to_ptr.vmem [resolvable:$true] %s14
      %17 = dma.hbm_to_vmem [thread:$0]  %s0, 256, %s15, [#allocation3]
    $region5: #{tpu_custom_call.1} parent=1 // pred_fallthru
      _
    // Predicated region
    $region6: #{tpu_custom_call.1} parent=1 // pred_check
      _
    $region7: #{tpu_custom_call.1} parent=1 // pred_check_branch
      %19 = sbr.rel (0) target = $region9
    $region8: #{tpu_custom_call.1} parent=1 // pred_region
      %20 = dma.done [#allocation3], 256
    $region9: #{tpu_custom_call.1} parent=1 // pred_fallthru
      _
    %v21 = vld [vmem:[#allocation2] sm:$0xff]
    %v22 = vld [vmem:[#allocation2 + $0x8] sm:$0xff]
    %v23 = vtanh.pop %v21
    %v24 = vtanh.pop %v22
    %v25 = vmul.f32 %v23, 0.4995
    %v26 = vmul.f32 %v24, 0.4995
    %v27 = vadd.f32 %v25, 0.5
    %v28 = vadd.f32 %v26, 0.5
    %29 = vst [vmem:[#allocation5] sm:$0xff] %v27
    %30 = vst [vmem:[#allocation5 + $0x8] sm:$0xff] %v28
    // Predicated region
    $region10: #{tpu_custom_call.1} parent=1 // pred_check
      _
    $region11: #{tpu_custom_call.1} parent=1 // pred_check_branch
      %32 = sbr.rel (0) target = $region13
    $region12: #{tpu_custom_call.1} parent=1 // pred_region
      %s34 = ssub.s32 256, 256
      %35 = vsyncadd [#allocation4], %s34
      %s37 = sshll.u32 [#allocation5], 4
      %s38 = int_to_ptr.vmem [resolvable:$true] %s37
      %40 = dma.vmem_to_hbm [thread:$0]  %s38, 256, %s1, [#allocation4]
    $region13: #{tpu_custom_call.1} parent=1 // pred_fallthru
      _
    // Predicated region
    $region14: #{tpu_custom_call.1} parent=1 // pred_check
      _
    $region15: #{tpu_custom_call.1} parent=1 // pred_check_branch
      %42 = sbr.rel (0) target = $region17
    $region16: #{tpu_custom_call.1} parent=1 // pred_region
      %43 = dma.done [#allocation4], 256
    $region17: #{tpu_custom_call.1} parent=1 // pred_fallthru
      _
    %44 = vsyncpa [#allocation3], 1
    %45 = vsyncpa [#allocation4], 1

</llo_original>
